<compile_context>
chip_gen: v6e
topology: v6e:2x2x1
jax: 0.10.0
libtpu: 0.0.40
codegen_flags: <defaults>
</compile_context>

<pallas_src>
import functools

import jax
import jax.numpy as jnp
from jax import lax
from jax.experimental import pallas as pl
from jax.experimental.pallas import tpu as pltpu


def _round_up(x, m):
    return ((x + m - 1) // m) * m


def _choose_tile_n(n_groups, group_pad):
    """Groups (frames / sentences) per grid step. TILE_M = tile_n * group_pad rows."""
    if n_groups < 8:
        # Small batch: full-first-dim block (legal when block dim == array dim);
        # avoids padding to 8 groups (2x wasted rows) and an extra HBM copy of x.
        return n_groups
    max_rows = 4096                       # ~2 MB bf16 x-tile at F_pad=256 (~4 MB double-buffered)
    cap = max(8, (max_rows // max(group_pad, 1)) // 8 * 8)
    need = _round_up(n_groups, 8)
    if need >= 16:
        # Keep >= 2 grid steps so dimension_semantics=("parallel",) can shard the grid
        # across both TensorCores on v7x.
        cap = min(cap, max(8, (need // 2) // 8 * 8))
    return max(8, min(cap, need))


# ----------------------------------------------------------------------------
# Fused encoder kernel:
#   out = mean_over_group(relu(x @ W1 + b1)) @ W2 + b2
# One x tile holds `tile_n` whole groups, so the mean-pool stays in-tile
# (VPU/XLU reshape + sum; no pool matrix, no extra DMA).
# ----------------------------------------------------------------------------
def _mlp_pool_proj(x, w1_ref, b1_ref, w2_ref, b2_ref, out_ref, *,
                   group, group_pad, inv_group):
    tile_n = out_ref.shape[0]
    h = jnp.dot(x, w1_ref[...], preferred_element_type=jnp.float32)
    h = jnp.maximum(h + b1_ref[...], 0.0)                       # bias + ReLU in f32 (VPU)
    d = h.shape[1]
    # Sum-pool over each group of group_pad consecutive rows; group_pad is a multiple of
    # 8 so the reshape never splits an (8,128) sublane tile (no Mosaic relayout copy).
    pooled = h.reshape(tile_n, group_pad, d).sum(axis=1)
    if group_pad != group:
        # zero-input pad rows each contribute relu(b1); remove statically (usually absent)
        pooled = pooled - float(group_pad - group) * jnp.maximum(b1_ref[...], 0.0)
    if inv_group != 1.0:                  # text path only (image scale is folded into W2)
        pooled = pooled * inv_group
    out = jnp.dot(pooled.astype(w2_ref.dtype), w2_ref[...],
                  preferred_element_type=jnp.float32)
    out_ref[...] = (out + b2_ref[...]).astype(out_ref.dtype)


def _dense_encoder_kernel(x_ref, w1_ref, b1_ref, w2_ref, b2_ref, out_ref, *,
                          group, group_pad, inv_group):
    _mlp_pool_proj(x_ref[...], w1_ref, b1_ref, w2_ref, b2_ref, out_ref,
                   group=group, group_pad=group_pad, inv_group=inv_group)


def _token_encoder_kernel(tok_ref, tbl_ref, w1_ref, b1_ref, w2_ref, b2_ref, out_ref, *,
                          group, group_pad, inv_group):
    # Fused embedding lookup: the bf16 table stays VMEM-resident and rows are gathered
    # with a one-hot MXU matmul (exact for one-hot weights), so the embedded activations
    # never round-trip HBM between the gather and the MLP.
    # TODO(synk): for a realistic CLIP vocab (49408) replace the one-hot matmul with a
    # DMA / scalar-prefetch row gather.
    ids = tok_ref[...]                                          # (tile_m, 1) int32
    rows, vocab = ids.shape[0], tbl_ref.shape[0]
    onehot = jnp.where(ids == lax.broadcasted_iota(jnp.int32, (rows, vocab), 1), 1.0, 0.0)
    x = jnp.dot(onehot.astype(tbl_ref.dtype), tbl_ref[...],
                preferred_element_type=jnp.float32).astype(w1_ref.dtype)
    _mlp_pool_proj(x, w1_ref, b1_ref, w2_ref, b2_ref, out_ref,
                   group=group, group_pad=group_pad, inv_group=inv_group)


def _pallas_encoder(kernel_body, stream_input, stream_block, resident_inputs,
                    out_dim, n_pad, tile_n, cost):
    grid = (n_pad // tile_n,)

    def call(single_buffer_residents):
        res_kw = dict(pipeline_mode=pl.Buffered(1)) if single_buffer_residents else {}
        in_specs = [pl.BlockSpec(stream_block, lambda i: (i, 0))]       # streamed row tiles
        in_specs += [pl.BlockSpec(r.shape, lambda i: (0, 0), **res_kw)  # resident params
                     for r in resident_inputs]
        return pl.pallas_call(
            kernel_body,
            out_shape=jax.ShapeDtypeStruct((n_pad, out_dim), jnp.float32),
            grid=grid,
            in_specs=in_specs,
            out_specs=pl.BlockSpec((tile_n, out_dim), lambda i: (i, 0)),
            compiler_params=pltpu.CompilerParams(
                dimension_semantics=("parallel",),
                vmem_limit_bytes=32 * 1024 * 1024,   # v5e scoped default is only 16 MiB
            ),
            cost_estimate=cost,
        )(stream_input, *resident_inputs)

    try:
        # Residents (weights / biases / table) have a constant index_map -> one VMEM
        # buffer is enough; frees headroom for larger streamed tiles.
        return call(True)
    except Exception:   # fall back if this jax build rejects Buffered(buffer_count=1)
        return call(False)


def _encode_dense(x, group, w1, b1, w2, b2, *, inv_group=1.0):
    # x: (n_groups * group, F_pad) bf16, F_pad a multiple of 128.
    M, F = x.shape
    n_groups = M // group
    group_pad = _round_up(group, 8)          # keep the pooling reshape sublane-aligned
    if group_pad != group:
        x = jnp.pad(x.reshape(n_groups, group, F),
                    ((0, 0), (0, group_pad - group), (0, 0))).reshape(-1, F)
    tile_n = _choose_tile_n(n_groups, group_pad)
    n_pad = _round_up(n_groups, tile_n)
    if n_pad != n_groups:                    # pad with whole groups of zero rows
        x = jnp.pad(x, ((0, (n_pad - n_groups) * group_pad), (0, 0)))
    D, O = w1.shape[1], w2.shape[1]
    cost = pl.CostEstimate(
        flops=2 * n_pad * group_pad * F * D + 2 * n_pad * D * O,
        transcendentals=0,
        bytes_accessed=int(n_pad * group_pad * F * 2 + F * D * 2 + D * O * 2
                           + D * 4 + O * 4 + n_pad * O * 4),
    )
    kernel = functools.partial(_dense_encoder_kernel, group=group,
                               group_pad=group_pad, inv_group=inv_group)
    out = _pallas_encoder(kernel, x, (tile_n * group_pad, F), [w1, b1, w2, b2],
                          O, n_pad, tile_n, cost)
    return out[:n_groups]


def _encode_tokens(tokens, tok_emb, pad_id, w1, b1, w2, b2, *, inv_group):
    # tokens: (n_groups, seq) int32; tok_emb: (VOCAB_PAD, EMB_PAD) bf16 with zero pad rows.
    n_groups, seq = tokens.shape
    group_pad = _round_up(seq, 8)
    if group_pad != seq:                     # PAD-id tokens embed to all-zero table rows
        tokens = jnp.pad(tokens, ((0, 0), (0, group_pad - seq)), constant_values=pad_id)
    tile_n = _choose_tile_n(n_groups, group_pad)
    n_pad = _round_up(n_groups, tile_n)
    if n_pad != n_groups:
        tokens = jnp.pad(tokens, ((0, n_pad - n_groups), (0, 0)), constant_values=pad_id)
    ids = tokens.reshape(n_pad * group_pad, 1).astype(jnp.int32)
    V, E = tok_emb.shape
    D, O = w1.shape[1], w2.shape[1]
    cost = pl.CostEstimate(
        flops=2 * n_pad * group_pad * (V * E + E * D) + 2 * n_pad * D * O,
        transcendentals=0,
        bytes_accessed=int(n_pad * group_pad * 4 + V * E * 2 + E * D * 2 + D * O * 2
                           + D * 4 + O * 4 + n_pad * O * 4),
    )
    kernel = functools.partial(_token_encoder_kernel, group=seq,
                               group_pad=group_pad, inv_group=inv_group)
    out = _pallas_encoder(kernel, ids, (tile_n * group_pad, 1),
                          [tok_emb, w1, b1, w2, b2], O, n_pad, tile_n, cost)
    return out[:n_groups]


# ----------------------------------------------------------------------------
# Synthetic CLIP module (deterministic parameters, no checkpoint load)
# ----------------------------------------------------------------------------
class SyntheticCLIP:
    # TODO(synk): real CLIP RN50 (output_dim=1024, 224x224 input, ResNet visual +
    # transformer text tower, clip.tokenize) cannot be loaded here; shapes scaled down.
    RESOLUTION = 32          # stand-in for CLIP's 224x224 bicubic resize
    PATCH = 8
    IMG_CHANNELS = 3
    IMG_HIDDEN = 128
    TXT_EMBED = 64
    TXT_EMBED_PAD = 128      # padded so the K dim of the text matmul is lane-aligned
    TXT_HIDDEN = 128
    VOCAB = 100
    VOCAB_PAD = 128          # table rows padded; rows >= VOCAB are zero (used as PAD id)
    OUTPUT_DIM = 64          # self.hidden_size analogue (RN50 -> 1024)
    OUT_PAD = 128            # lane-dense output width; sliced back to OUTPUT_DIM

    def __init__(self, key):
        ks = jax.random.split(key, 5)
        P, C = self.PATCH, self.IMG_CHANNELS
        self.IMG_F = C * P * P                       # 192
        self.IMG_F_PAD = _round_up(self.IMG_F, 128)  # 256
        self.N_PATCH = (self.RESOLUTION // P) ** 2   # 16 (static -> mean scale folded into W2)
        self.PAD_ID = self.VOCAB                     # embeds to an all-zero table row

        def pad_rows(w, rows):
            return jnp.pad(w, ((0, rows - w.shape[0]), (0, 0)))

        def pad_cols(w, cols):
            return jnp.pad(w, ((0, 0), (0, cols - w.shape[1])))

        # image encoder params (matmul weights stored bf16, zero-padded to aligned dims)
        img_w1 = 0.02 * jax.random.normal(ks[0], (self.IMG_F, self.IMG_HIDDEN), jnp.float32)
        self.img_w1 = pad_rows(img_w1, self.IMG_F_PAD).astype(jnp.bfloat16)
        self.img_b1 = jnp.zeros((1, self.IMG_HIDDEN), jnp.float32)
        img_w2 = 0.02 * jax.random.normal(ks[1], (self.IMG_HIDDEN, self.OUTPUT_DIM), jnp.float32)
        # fold the 1/n_patches mean scale into W2 (n_patches is a static model constant)
        self.img_w2 = (pad_cols(img_w2, self.OUT_PAD) / self.N_PATCH).astype(jnp.bfloat16)
        self.img_b2 = jnp.zeros((1, self.OUT_PAD), jnp.float32)

        # text encoder params
        tok = 0.02 * jax.random.normal(ks[2], (self.VOCAB, self.TXT_EMBED), jnp.float32)
        self.tok_emb = jnp.pad(
            tok, ((0, self.VOCAB_PAD - self.VOCAB),
                  (0, self.TXT_EMBED_PAD - self.TXT_EMBED))).astype(jnp.bfloat16)
        txt_w1 = 0.02 * jax.random.normal(ks[3], (self.TXT_EMBED, self.TXT_HIDDEN), jnp.float32)
        self.txt_w1 = pad_rows(txt_w1, self.TXT_EMBED_PAD).astype(jnp.bfloat16)
        self.txt_b1 = jnp.zeros((1, self.TXT_HIDDEN), jnp.float32)
        txt_w2 = 0.02 * jax.random.normal(ks[4], (self.TXT_HIDDEN, self.OUTPUT_DIM), jnp.float32)
        self.txt_w2 = pad_cols(txt_w2, self.OUT_PAD).astype(jnp.bfloat16)
        self.txt_b2 = jnp.zeros((1, self.OUT_PAD), jnp.float32)

        self.hidden_size = self.OUTPUT_DIM

    # ---- glue: NCHW frames -> (rows, patch_features) ----
    def _patchify(self, imgs):
        n, c, H, W = imgs.shape
        p = self.PATCH
        gh, gw = H // p, W // p
        x = imgs.reshape(n, c, gh, p, gw, p)
        x = jnp.transpose(x, (0, 2, 4, 1, 3, 5))         # (n, gh, gw, c, p, p)
        x = x.reshape(n * gh * gw, c * p * p)            # patch features in (c,ph,pw) order
        return x, gh * gw

    def get_image_feature(self, img):
        # img: (n, c, h, w)  ->  (n, OUTPUT_DIM)
        n = img.shape[0]
        img = jax.image.resize(
            img, (n, self.IMG_CHANNELS, self.RESOLUTION, self.RESOLUTION),
            method="bicubic")                            # ~ F.interpolate(bicubic, align_corners=False)
        patches, n_patches = self._patchify(img)
        patches = jnp.pad(
            patches, ((0, 0), (0, self.IMG_F_PAD - self.IMG_F))).astype(jnp.bfloat16)
        out = _encode_dense(patches, n_patches, self.img_w1, self.img_b1,
                            self.img_w2, self.img_b2, inv_group=1.0)  # scale lives in img_w2
        return out[:, :self.OUTPUT_DIM]

    def get_text_feature(self, tokens):
        # tokens: (n_sent, seq) int32  ->  (n_sent, OUTPUT_DIM)
        # TODO(synk): clip.tokenize / transformer text tower replaced by embedding+MLP.
        seq = tokens.shape[1]
        out = _encode_tokens(tokens, self.tok_emb, self.PAD_ID,
                             self.txt_w1, self.txt_b1, self.txt_w2, self.txt_b2,
                             inv_group=1.0 / seq)
        return out[:, :self.OUTPUT_DIM]

    def forward(self, videos, caption):
        # videos:  (b, t, c, h, w) float32
        # caption: (b, n_sent, seq) int32
        b, t = videos.shape[0], videos.shape[1]
        n_sent = caption.shape[1]
        # text: torch loops over the batch; rows are independent -> one vectorized pass
        tfeat = self.get_text_feature(caption.reshape(b * n_sent, caption.shape[2]))
        cFeature = tfeat.reshape(b, n_sent, self.hidden_size)
        # image: '(b t) c h w'
        frames = videos.reshape(b * t, *videos.shape[2:])
        iFeature = self.get_image_feature(frames).astype(jnp.float32)
        vFeature = iFeature.reshape(b, t, self.hidden_size)
        return vFeature, cFeature


def _reference_forward(model, videos, caption):
    """Pure-JAX (no Pallas) reference with the same bf16 rounding points."""
    b, t = videos.shape[0], videos.shape[1]
    frames = videos.reshape(b * t, *videos.shape[2:])
    frames = jax.image.resize(
        frames, (b * t, model.IMG_CHANNELS, model.RESOLUTION, model.RESOLUTION),
        method="bicubic")
    patches, n_patch = model._patchify(frames)
    x = jnp.pad(patches, ((0, 0), (0, model.IMG_F_PAD - model.IMG_F))).astype(jnp.bfloat16)
    h = jnp.maximum(jnp.dot(x, model.img_w1, preferred_element_type=jnp.float32)
                    + model.img_b1, 0.0)
    pooled = h.reshape(b * t, n_patch, -1).sum(axis=1)          # 1/n_patch lives in img_w2
    iF = jnp.dot(pooled.astype(jnp.bfloat16), model.img_w2,
                 preferred_element_type=jnp.float32) + model.img_b2
    vRef = iF[:, :model.OUTPUT_DIM].reshape(b, t, -1)

    bsz, n_sent, seq = caption.shape
    emb = jnp.take(model.tok_emb, caption.reshape(-1), axis=0)  # bf16 table rows
    h = jnp.maximum(jnp.dot(emb, model.txt_w1, preferred_element_type=jnp.float32)
                    + model.txt_b1, 0.0)
    pooled = h.reshape(bsz * n_sent, seq, -1).sum(axis=1) * (1.0 / seq)
    tF = jnp.dot(pooled.astype(jnp.bfloat16), model.txt_w2,
                 preferred_element_type=jnp.float32) + model.txt_b2
    cRef = tF[:, :model.OUTPUT_DIM].reshape(bsz, n_sent, -1)
    return vRef, cRef


if __name__ == "__main__":
    key = jax.random.PRNGKey(0)
    k_model, k_vid, k_txt = jax.random.split(key, 3)

    model = SyntheticCLIP(k_model)

    b, t, c, h, w = 2, 2, 3, 16, 16
    n_sent, seq = 1, 8
    videos = jax.random.normal(k_vid, (b, t, c, h, w), jnp.float32)
    caption = jax.random.randint(k_txt, (b, n_sent, seq), 0, SyntheticCLIP.VOCAB,
                                 dtype=jnp.int32)

    vFeature, cFeature = model.forward(videos, caption)
    jax.block_until_ready((vFeature, cFeature))

    assert vFeature.shape == (b, t, model.hidden_size), vFeature.shape
    assert cFeature.shape == (b, n_sent, model.hidden_size), cFeature.shape
    assert vFeature.dtype == jnp.float32 and cFeature.dtype == jnp.float32

    # tolerance-asserted pure-JAX reference (same bf16 rounding points as the kernels)
    vRef, cRef = _reference_forward(model, videos, caption)
    assert bool(jnp.allclose(vFeature, vRef, rtol=5e-2, atol=5e-3)), \
        float(jnp.max(jnp.abs(vFeature - vRef)))
    assert bool(jnp.allclose(cFeature, cRef, rtol=5e-2, atol=5e-3)), \
        float(jnp.max(jnp.abs(cFeature - cRef)))

    print("KERNEL_OK")
</pallas_src>

<mosaic_0001>
module attributes {stable_mosaic.version = 11 : i64} {
  func.func @_token_encoder_kernel(%arg0: i32, %arg1: memref<16x1xi32, #tpu.memory_space<vmem>>, %arg2: memref<128x128xbf16, #tpu.memory_space<vmem>>, %arg3: memref<128x128xbf16, #tpu.memory_space<vmem>>, %arg4: memref<1x128xf32, #tpu.memory_space<vmem>>, %arg5: memref<128x128xbf16, #tpu.memory_space<vmem>>, %arg6: memref<1x128xf32, #tpu.memory_space<vmem>>, %arg7: memref<2x128xf32, #tpu.memory_space<vmem>>) attributes {dimension_semantics = [#tpu.dimension_semantics<parallel>], iteration_bounds = array<i64: 1>, scalar_prefetch = 0 : i64, scratch_operands = 0 : i64, tpu.core_type = #tpu.core_type<tc>, window_params = [{transform_indices = @transform_0, window_bounds = array<i64: 16, 1>}, {pipeline_mode = #tpu.pipeline_mode<synchronous>, transform_indices = @transform_1, window_bounds = array<i64: 128, 128>}, {pipeline_mode = #tpu.pipeline_mode<synchronous>, transform_indices = @transform_2, window_bounds = array<i64: 128, 128>}, {pipeline_mode = #tpu.pipeline_mode<synchronous>, transform_indices = @transform_3, window_bounds = array<i64: 1, 128>}, {pipeline_mode = #tpu.pipeline_mode<synchronous>, transform_indices = @transform_4, window_bounds = array<i64: 128, 128>}, {pipeline_mode = #tpu.pipeline_mode<synchronous>, transform_indices = @transform_5, window_bounds = array<i64: 1, 128>}, {transform_indices = @transform_6, window_bounds = array<i64: 2, 128>}]} {
    %c0 = arith.constant 0 : index
    %c0_0 = arith.constant 0 : index
    %0 = vector.load %arg1[%c0, %c0_0] : memref<16x1xi32, #tpu.memory_space<vmem>>, vector<16x1xi32>
    %1 = tpu.iota {dimensions = array<i32: 1>} : vector<16x128xi32>
    %2 = vector.broadcast %0 : vector<16x1xi32> to vector<16x128xi32>
    %3 = arith.cmpi eq, %2, %1 : vector<16x128xi32>
    %cst = arith.constant 1.000000e+00 : f32
    %cst_1 = arith.constant 0.000000e+00 : f32
    %4 = vector.broadcast %cst : f32 to vector<16x128xf32>
    %5 = vector.broadcast %cst_1 : f32 to vector<16x128xf32>
    %6 = arith.select %3, %4, %5 : vector<16x128xi1>, vector<16x128xf32>
    %7 = arith.truncf %6 : vector<16x128xf32> to vector<16x128xbf16>
    %c0_2 = arith.constant 0 : index
    %c0_3 = arith.constant 0 : index
    %8 = vector.load %arg2[%c0_2, %c0_3] : memref<128x128xbf16, #tpu.memory_space<vmem>>, vector<128x128xbf16>
    %cst_4 = arith.constant dense<0.000000e+00> : vector<16x128xf32>
    %9 = tpu.matmul %7, %8, %cst_4 {dimension_numbers = #tpu.dot_dimension_numbers<[1], [0], [0], [1], [0, 0, 1, 1], [], []>} : vector<16x128xbf16>, vector<128x128xbf16>, vector<16x128xf32> -> vector<16x128xf32>
    %10 = arith.truncf %9 : vector<16x128xf32> to vector<16x128xbf16>
    %c0_5 = arith.constant 0 : index
    %c0_6 = arith.constant 0 : index
    %11 = vector.load %arg3[%c0_5, %c0_6] : memref<128x128xbf16, #tpu.memory_space<vmem>>, vector<128x128xbf16>
    %cst_7 = arith.constant dense<0.000000e+00> : vector<16x128xf32>
    %12 = tpu.matmul %10, %11, %cst_7 {dimension_numbers = #tpu.dot_dimension_numbers<[1], [0], [0], [1], [0, 0, 1, 1], [], []>} : vector<16x128xbf16>, vector<128x128xbf16>, vector<16x128xf32> -> vector<16x128xf32>
    %c0_8 = arith.constant 0 : index
    %c0_9 = arith.constant 0 : index
    %13 = vector.load %arg4[%c0_8, %c0_9] : memref<1x128xf32, #tpu.memory_space<vmem>>, vector<1x128xf32>
    %14 = vector.broadcast %13 : vector<1x128xf32> to vector<16x128xf32>
    %15 = arith.addf %12, %14 : vector<16x128xf32>
    %cst_10 = arith.constant 0.000000e+00 : f32
    %16 = vector.broadcast %cst_10 : f32 to vector<16x128xf32>
    %17 = arith.maximumf %15, %16 : vector<16x128xf32>
    %18 = vector.shape_cast %17 : vector<16x128xf32> to vector<2x8x128xf32>
    %cst_11 = arith.constant dense<0.000000e+00> : vector<2x128xf32>
    %19 = vector.multi_reduction <add>, %18, %cst_11 [1] : vector<2x8x128xf32> to vector<2x128xf32>
    %cst_12 = arith.constant 1.250000e-01 : f32
    %20 = vector.broadcast %cst_12 : f32 to vector<2x128xf32>
    %21 = arith.mulf %19, %20 : vector<2x128xf32>
    %22 = arith.truncf %21 : vector<2x128xf32> to vector<2x128xbf16>
    %c0_13 = arith.constant 0 : index
    %c0_14 = arith.constant 0 : index
    %23 = vector.load %arg5[%c0_13, %c0_14] : memref<128x128xbf16, #tpu.memory_space<vmem>>, vector<128x128xbf16>
    %cst_15 = arith.constant dense<0.000000e+00> : vector<2x128xf32>
    %24 = tpu.matmul %22, %23, %cst_15 {dimension_numbers = #tpu.dot_dimension_numbers<[1], [0], [0], [1], [0, 0, 1, 1], [], []>} : vector<2x128xbf16>, vector<128x128xbf16>, vector<2x128xf32> -> vector<2x128xf32>
    %c0_16 = arith.constant 0 : index
    %c0_17 = arith.constant 0 : index
    %25 = vector.load %arg6[%c0_16, %c0_17] : memref<1x128xf32, #tpu.memory_space<vmem>>, vector<1x128xf32>
    %26 = vector.broadcast %25 : vector<1x128xf32> to vector<2x128xf32>
    %27 = arith.addf %24, %26 : vector<2x128xf32>
    %c0_18 = arith.constant 0 : index
    %c0_19 = arith.constant 0 : index
    %28 = vector.load %arg7[%c0_18, %c0_19] : memref<2x128xf32, #tpu.memory_space<vmem>>, vector<2x128xf32>
    tpu.vector_store %arg7[%c0_18, %c0_19], %27 {strides = array<i32>} : memref<2x128xf32, #tpu.memory_space<vmem>>, vector<2x128xf32>,
    return
  }
  func.func @transform_0(%arg0: i32) -> (i32, i32) {
    %c0_i32 = arith.constant 0 : i32
    %c0_i32_0 = arith.constant 0 : i32
    return %arg0, %c0_i32 : i32, i32
  }
  func.func @transform_1(%arg0: i32) -> (i32, i32) {
    %c0_i32 = arith.constant 0 : i32
    %c0_i32_0 = arith.constant 0 : i32
    %c0_i32_1 = arith.constant 0 : i32
    return %c0_i32, %c0_i32_0 : i32, i32
  }
  func.func @transform_2(%arg0: i32) -> (i32, i32) {
    %c0_i32 = arith.constant 0 : i32
    %c0_i32_0 = arith.constant 0 : i32
    %c0_i32_1 = arith.constant 0 : i32
    return %c0_i32, %c0_i32_0 : i32, i32
  }
  func.func @transform_3(%arg0: i32) -> (i32, i32) {
    %c0_i32 = arith.constant 0 : i32
    %c0_i32_0 = arith.constant 0 : i32
    %c0_i32_1 = arith.constant 0 : i32
    return %c0_i32, %c0_i32_0 : i32, i32
  }
  func.func @transform_4(%arg0: i32) -> (i32, i32) {
    %c0_i32 = arith.constant 0 : i32
    %c0_i32_0 = arith.constant 0 : i32
    %c0_i32_1 = arith.constant 0 : i32
    return %c0_i32, %c0_i32_0 : i32, i32
  }
  func.func @transform_5(%arg0: i32) -> (i32, i32) {
    %c0_i32 = arith.constant 0 : i32
    %c0_i32_0 = arith.constant 0 : i32
    %c0_i32_1 = arith.constant 0 : i32
    return %c0_i32, %c0_i32_0 : i32, i32
  }
  func.func @transform_6(%arg0: i32) -> (i32, i32) {
    %c0_i32 = arith.constant 0 : i32
    %c0_i32_0 = arith.constant 0 : i32
    return %arg0, %c0_i32 : i32, i32
  }
}

module attributes {stable_mosaic.version = 11 : i64} {
  func.func @_token_encoder_kernel(%arg0: i32, %arg1: memref<16x1xi32, #tpu.memory_space<vmem>>, %arg2: memref<128x128xbf16, #tpu.memory_space<vmem>>, %arg3: memref<128x128xbf16, #tpu.memory_space<vmem>>, %arg4: memref<1x128xf32, #tpu.memory_space<vmem>>, %arg5: memref<128x128xbf16, #tpu.memory_space<vmem>>, %arg6: memref<1x128xf32, #tpu.memory_space<vmem>>, %arg7: memref<2x128xf32, #tpu.memory_space<vmem>>) attributes {dimension_semantics = [#tpu.dimension_semantics<parallel>], iteration_bounds = array<i64: 1>, scalar_prefetch = 0 : i64, scratch_operands = 0 : i64, tpu.core_type = #tpu.core_type<tc>, window_params = [{transform_indices = @transform_0, window_bounds = array<i64: 16, 1>}, {pipeline_mode = #tpu.pipeline_mode<synchronous>, transform_indices = @transform_1, window_bounds = array<i64: 128, 128>}, {pipeline_mode = #tpu.pipeline_mode<synchronous>, transform_indices = @transform_2, window_bounds = array<i64: 128, 128>}, {pipeline_mode = #tpu.pipeline_mode<synchronous>, transform_indices = @transform_3, window_bounds = array<i64: 1, 128>}, {pipeline_mode = #tpu.pipeline_mode<synchronous>, transform_indices = @transform_4, window_bounds = array<i64: 128, 128>}, {pipeline_mode = #tpu.pipeline_mode<synchronous>, transform_indices = @transform_5, window_bounds = array<i64: 1, 128>}, {transform_indices = @transform_6, window_bounds = array<i64: 2, 128>}]} {
    %c0 = arith.constant 0 : index
    %c0_0 = arith.constant 0 : index
    %0 = vector.load %arg1[%c0, %c0_0] : memref<16x1xi32, #tpu.memory_space<vmem>>, vector<16x1xi32>
    %1 = tpu.iota {dimensions = array<i32: 1>} : vector<16x128xi32>
    %2 = vector.broadcast %0 : vector<16x1xi32> to vector<16x128xi32>
    %3 = arith.cmpi eq, %2, %1 : vector<16x128xi32>
    %cst = arith.constant 1.000000e+00 : f32
    %cst_1 = arith.constant 0.000000e+00 : f32
    %4 = vector.broadcast %cst : f32 to vector<16x128xf32>
    %5 = vector.broadcast %cst_1 : f32 to vector<16x128xf32>
    %6 = arith.select %3, %4, %5 : vector<16x128xi1>, vector<16x128xf32>
    %7 = arith.truncf %6 : vector<16x128xf32> to vector<16x128xbf16>
    %c0_2 = arith.constant 0 : index
    %c0_3 = arith.constant 0 : index
    %8 = vector.load %arg2[%c0_2, %c0_3] : memref<128x128xbf16, #tpu.memory_space<vmem>>, vector<128x128xbf16>
    %cst_4 = arith.constant dense<0.000000e+00> : vector<16x128xf32>
    %9 = tpu.matmul %7, %8, %cst_4 {dimension_numbers = #tpu.dot_dimension_numbers<[1], [0], [0], [1], [0, 0, 1, 1], [], []>} : vector<16x128xbf16>, vector<128x128xbf16>, vector<16x128xf32> -> vector<16x128xf32>
    %10 = arith.truncf %9 : vector<16x128xf32> to vector<16x128xbf16>
    %c0_5 = arith.constant 0 : index
    %c0_6 = arith.constant 0 : index
    %11 = vector.load %arg3[%c0_5, %c0_6] : memref<128x128xbf16, #tpu.memory_space<vmem>>, vector<128x128xbf16>
    %cst_7 = arith.constant dense<0.000000e+00> : vector<16x128xf32>
    %12 = tpu.matmul %10, %11, %cst_7 {dimension_numbers = #tpu.dot_dimension_numbers<[1], [0], [0], [1], [0, 0, 1, 1], [], []>} : vector<16x128xbf16>, vector<128x128xbf16>, vector<16x128xf32> -> vector<16x128xf32>
    %c0_8 = arith.constant 0 : index
    %c0_9 = arith.constant 0 : index
    %13 = vector.load %arg4[%c0_8, %c0_9] : memref<1x128xf32, #tpu.memory_space<vmem>>, vector<1x128xf32>
    %14 = vector.broadcast %13 : vector<1x128xf32> to vector<16x128xf32>
    %15 = arith.addf %12, %14 : vector<16x128xf32>
    %cst_10 = arith.constant 0.000000e+00 : f32
    %16 = vector.broadcast %cst_10 : f32 to vector<16x128xf32>
    %17 = arith.maximumf %15, %16 : vector<16x128xf32>
    %18 = vector.shape_cast %17 : vector<16x128xf32> to vector<2x8x128xf32>
    %cst_11 = arith.constant dense<0.000000e+00> : vector<2x128xf32>
    %19 = vector.multi_reduction <add>, %18, %cst_11 [1] : vector<2x8x128xf32> to vector<2x128xf32>
    %cst_12 = arith.constant 1.250000e-01 : f32
    %20 = vector.broadcast %cst_12 : f32 to vector<2x128xf32>
    %21 = arith.mulf %19, %20 : vector<2x128xf32>
    %22 = arith.truncf %21 : vector<2x128xf32> to vector<2x128xbf16>
    %c0_13 = arith.constant 0 : index
    %c0_14 = arith.constant 0 : index
    %23 = vector.load %arg5[%c0_13, %c0_14] : memref<128x128xbf16, #tpu.memory_space<vmem>>, vector<128x128xbf16>
    %cst_15 = arith.constant dense<0.000000e+00> : vector<2x128xf32>
    %24 = tpu.matmul %22, %23, %cst_15 {dimension_numbers = #tpu.dot_dimension_numbers<[1], [0], [0], [1], [0, 0, 1, 1], [], []>} : vector<2x128xbf16>, vector<128x128xbf16>, vector<2x128xf32> -> vector<2x128xf32>
    %c0_16 = arith.constant 0 : index
    %c0_17 = arith.constant 0 : index
    %25 = vector.load %arg6[%c0_16, %c0_17] : memref<1x128xf32, #tpu.memory_space<vmem>>, vector<1x128xf32>
    %26 = vector.broadcast %25 : vector<1x128xf32> to vector<2x128xf32>
    %27 = arith.addf %24, %26 : vector<2x128xf32>
    %c0_18 = arith.constant 0 : index
    %c0_19 = arith.constant 0 : index
    %28 = vector.load %arg7[%c0_18, %c0_19] : memref<2x128xf32, #tpu.memory_space<vmem>>, vector<2x128xf32>
    tpu.vector_store %arg7[%c0_18, %c0_19], %27 {strides = array<i32>} : memref<2x128xf32, #tpu.memory_space<vmem>>, vector<2x128xf32>,
    return
  }
  func.func @transform_0(%arg0: i32) -> (i32, i32) {
    %c0_i32 = arith.constant 0 : i32
    %c0_i32_0 = arith.constant 0 : i32
    return %arg0, %c0_i32 : i32, i32
  }
  func.func @transform_1(%arg0: i32) -> (i32, i32) {
    %c0_i32 = arith.constant 0 : i32
    %c0_i32_0 = arith.constant 0 : i32
    %c0_i32_1 = arith.constant 0 : i32
    return %c0_i32, %c0_i32_0 : i32, i32
  }
  func.func @transform_2(%arg0: i32) -> (i32, i32) {
    %c0_i32 = arith.constant 0 : i32
    %c0_i32_0 = arith.constant 0 : i32
    %c0_i32_1 = arith.constant 0 : i32
    return %c0_i32, %c0_i32_0 : i32, i32
  }
  func.func @transform_3(%arg0: i32) -> (i32, i32) {
    %c0_i32 = arith.constant 0 : i32
    %c0_i32_0 = arith.constant 0 : i32
    %c0_i32_1 = arith.constant 0 : i32
    return %c0_i32, %c0_i32_0 : i32, i32
  }
  func.func @transform_4(%arg0: i32) -> (i32, i32) {
    %c0_i32 = arith.constant 0 : i32
    %c0_i32_0 = arith.constant 0 : i32
    %c0_i32_1 = arith.constant 0 : i32
    return %c0_i32, %c0_i32_0 : i32, i32
  }
  func.func @transform_5(%arg0: i32) -> (i32, i32) {
    %c0_i32 = arith.constant 0 : i32
    %c0_i32_0 = arith.constant 0 : i32
    %c0_i32_1 = arith.constant 0 : i32
    return %c0_i32, %c0_i32_0 : i32, i32
  }
  func.func @transform_6(%arg0: i32) -> (i32, i32) {
    %c0_i32 = arith.constant 0 : i32
    %c0_i32_0 = arith.constant 0 : i32
    return %arg0, %c0_i32 : i32, i32
  }
}

</mosaic_0001>

<llo_original>
// kernel: tpu_custom_call.1
$region0: #{tpu_custom_call.1}
  #allocation0 [shape = 'u32[]', space=smem, size = 0x4, offset = 0x4, fixed_abs, tag = 'smem constant byte address 0x4 - core index']
  #allocation1 [shape = 'u32[144,128]{1,0:T(1,128)}', space=vmem, size = 0x12000, scoped, tag = 'internal scratch']
  %s0 = inlined_call_operand.vmem [shape: s32[16,1], index: 0, kind: input, shape index: {}]
  %s1 = inlined_call_operand.hbm [shape: bf16[128,128], index: 1, kind: input, shape index: {}]
  %s2 = inlined_call_operand.hbm [shape: bf16[128,128], index: 2, kind: input, shape index: {}]
  %s3 = inlined_call_operand.vmem [shape: f32[1,128], index: 3, kind: input, shape index: {}]
  %s4 = inlined_call_operand.hbm [shape: bf16[128,128], index: 4, kind: input, shape index: {}]
  %s5 = inlined_call_operand.vmem [shape: f32[1,128], index: 5, kind: input, shape index: {}]
  %s6 = inlined_call_operand.hbm [shape: f32[2,128], index: 6, kind: output, shape index: {}]
  %s7 = sld [smem:[#allocation0]]
  $region46: #{tpu_custom_call.1} parent=0
    _
  %s9 = ssub.s32 1, %s7
  %s10 = scalar_select 0, %s9, %s7
  $region1: #{tpu_custom_call.1} parent=0
    #allocation2 [shape = 'u8[32768]{0}', space=vmem, size = 0x8000, scoped, tag = 'input window, operand 1, single buffered']
    #allocation3 [shape = 's32[1]{0}', space=sflag, size = 0x4, scoped, tag = 'scoped memory for tpu_custom_call.1']
    #allocation4 [shape = 's32[1]{0}', space=sflag, size = 0x4, scoped, tag = 'scoped memory for tpu_custom_call.1']
    #allocation5 [shape = 'u8[32768]{0}', space=vmem, size = 0x8000, scoped, tag = 'input window, operand 2, single buffered']
    #allocation6 [shape = 's32[1]{0}', space=sflag, size = 0x4, scoped, tag = 'scoped memory for tpu_custom_call.1']
    #allocation7 [shape = 'u8[32768]{0}', space=vmem, size = 0x8000, scoped, tag = 'input window, operand 4, single buffered']
    #allocation8 [shape = 'u8[1024]{0}', space=vmem, size = 0x400, scoped, tag = 'output window, operand 0, single buffered']
    %11 = vsyncpa [#allocation3], 0
    %12 = vsyncpa [#allocation6], 0
    %13 = vsyncpa [#allocation4], 0
    // Predicated region
    $region2: #{tpu_custom_call.1} parent=1 // pred_check
      _
    $region3: #{tpu_custom_call.1} parent=1 // pred_check_branch
      %15 = sbr.rel (0) target = $region5
    $region4: #{tpu_custom_call.1} parent=1 // pred_region
      _
    $region5: #{tpu_custom_call.1} parent=1 // pred_fallthru
      _
    // Predicated region
    $region6: #{tpu_custom_call.1} parent=1 // pred_check
      _
    $region7: #{tpu_custom_call.1} parent=1 // pred_check_branch
      %17 = sbr.rel (0) target = $region9
    $region8: #{tpu_custom_call.1} parent=1 // pred_region
      %s19 = ssub.s32 1024, 1024
      %20 = vsyncadd [#allocation3], %s19
      %s21 = sshll.u32 [#allocation2], 4
      %s22 = int_to_ptr.vmem [resolvable:$true] %s21
      %27 = dma.hbm_to_vmem [thread:$0]  %s1, 1024, %s22, [#allocation3], 64, 64, 4
    $region9: #{tpu_custom_call.1} parent=1 // pred_fallthru
      _
    // Predicated region
    $region10: #{tpu_custom_call.1} parent=1 // pred_check
      _
    $region11: #{tpu_custom_call.1} parent=1 // pred_check_branch
      %29 = sbr.rel (0) target = $region13
    $region12: #{tpu_custom_call.1} parent=1 // pred_region
      %s31 = ssub.s32 1024, 1024
      %32 = vsyncadd [#allocation6], %s31
      %s33 = sshll.u32 [#allocation5], 4
      %s34 = int_to_ptr.vmem [resolvable:$true] %s33
      %39 = dma.hbm_to_vmem [thread:$0]  %s2, 1024, %s34, [#allocation6], 64, 64, 4
    $region13: #{tpu_custom_call.1} parent=1 // pred_fallthru
      _
    // Predicated region
    $region14: #{tpu_custom_call.1} parent=1 // pred_check
      _
    $region15: #{tpu_custom_call.1} parent=1 // pred_check_branch
      %41 = sbr.rel (0) target = $region17
    $region16: #{tpu_custom_call.1} parent=1 // pred_region
      _
    $region17: #{tpu_custom_call.1} parent=1 // pred_fallthru
      _
    // Predicated region
    $region18: #{tpu_custom_call.1} parent=1 // pred_check
      _
    $region19: #{tpu_custom_call.1} parent=1 // pred_check_branch
      %43 = sbr.rel (0) target = $region21
    $region20: #{tpu_custom_call.1} parent=1 // pred_region
      %s45 = ssub.s32 1024, 1024
      %46 = vsyncadd [#allocation6], %s45
      %s47 = sshll.u32 [#allocation7], 4
      %s48 = int_to_ptr.vmem [resolvable:$true] %s47
      %53 = dma.hbm_to_vmem [thread:$0]  %s4, 1024, %s48, [#allocation6], 64, 64, 4
    $region21: #{tpu_custom_call.1} parent=1 // pred_fallthru
      _
    // Predicated region
    $region22: #{tpu_custom_call.1} parent=1 // pred_check
      _
    $region23: #{tpu_custom_call.1} parent=1 // pred_check_branch
      %55 = sbr.rel (0) target = $region25
    $region24: #{tpu_custom_call.1} parent=1 // pred_region
      _
    $region25: #{tpu_custom_call.1} parent=1 // pred_fallthru
      _
    // Predicated region
    $region26: #{tpu_custom_call.1} parent=1 // pred_check
      _
    $region27: #{tpu_custom_call.1} parent=1 // pred_check_branch
      %57 = sbr.rel (0) target = $region29
    $region28: #{tpu_custom_call.1} parent=1 // pred_region
      %58 = dma.done [#allocation3], 1024
    $region29: #{tpu_custom_call.1} parent=1 // pred_fallthru
      _
    // Predicated region
    $region30: #{tpu_custom_call.1} parent=1 // pred_check
      _
    $region31: #{tpu_custom_call.1} parent=1 // pred_check_branch
      %60 = sbr.rel (0) target = $region33
    $region32: #{tpu_custom_call.1} parent=1 // pred_region
      %61 = dma.done [#allocation6], 1024
    $region33: #{tpu_custom_call.1} parent=1 // pred_fallthru
      _
    // Predicated region
    $region34: #{tpu_custom_call.1} parent=1 // pred_check
      _
    $region35: #{tpu_custom_call.1} parent=1 // pred_check_branch
      %63 = sbr.rel (0) target = $region37
    $region36: #{tpu_custom_call.1} parent=1 // pred_region
      %64 = dma.done [#allocation6], 1024
    $region37: #{tpu_custom_call.1} parent=1 // pred_fallthru
      _
    %v66 = vld [vmem:[%s0] sm:$0xff]
    %v67 = vld [vmem:[%s0 + $0x8] sm:$0xff]
    %v68 = vlaneseq
    %v69 = vand.u32 %v68, 127
    %70 = vset.pattern.permute.xlu0 0
    %71 = vperm.xlu0 %70, %v66
    %v72 = vpop.permute.xlu0 %71
    %73 = vset.pattern.permute.xlu0 0
    %74 = vperm.xlu0 %73, %v67
    %v75 = vpop.permute.xlu0 %74
    %vm76 = vcmp.eq.s32.totalorder %v72, %v69
    %vm77 = vcmp.eq.s32.totalorder %v75, %v69
    %v78 = vsel %vm76, 1.0, 0.0
    %v79 = vsel %vm77, 1.0, 0.0
    %v80 = vpack.c.bf16 %v79, %v78
    %v81 = vld [vmem:[#allocation2] sm:$0xf]
    %v82 = vld [vmem:[#allocation2 + $0x4] sm:$0xf]
    %v83 = vld [vmem:[#allocation2 + $0x8] sm:$0xf]
    %v84 = vld [vmem:[#allocation2 + $0xc] sm:$0xf]
    %v85 = vld [vmem:[#allocation2 + $0x10] sm:$0xf]
    %v86 = vld [vmem:[#allocation2 + $0x14] sm:$0xf]
    %v87 = vld [vmem:[#allocation2 + $0x18] sm:$0xf]
    %v88 = vld [vmem:[#allocation2 + $0x1c] sm:$0xf]
    %v89 = vld [vmem:[#allocation2 + $0x20] sm:$0xf]
    %v90 = vld [vmem:[#allocation2 + $0x24] sm:$0xf]
    %v91 = vld [vmem:[#allocation2 + $0x28] sm:$0xf]
    %v92 = vld [vmem:[#allocation2 + $0x2c] sm:$0xf]
    %v93 = vld [vmem:[#allocation2 + $0x30] sm:$0xf]
    %v94 = vld [vmem:[#allocation2 + $0x34] sm:$0xf]
    %v95 = vld [vmem:[#allocation2 + $0x38] sm:$0xf]
    %v96 = vld [vmem:[#allocation2 + $0x3c] sm:$0xf]
    %v113 = vunpack.c.l.b16 %v81
    %v114 = vunpack.c.l.b16 %v82
    %v115 = vunpack.c.l.b16 %v83
    %v116 = vunpack.c.l.b16 %v84
    %v117 = vunpack.c.l.b16 %v85
    %v118 = vunpack.c.l.b16 %v86
    %v119 = vunpack.c.l.b16 %v87
    %v120 = vunpack.c.l.b16 %v88
    %v121 = vunpack.c.l.b16 %v89
    %v122 = vunpack.c.l.b16 %v90
    %v123 = vunpack.c.l.b16 %v91
    %v124 = vunpack.c.l.b16 %v92
    %v125 = vunpack.c.l.b16 %v93
    %v126 = vunpack.c.l.b16 %v94
    %v127 = vunpack.c.l.b16 %v95
    %v128 = vunpack.c.l.b16 %v96
    %v129 = vpack.c.b16 %v114, %v113
    %v130 = vpack.c.b16 %v116, %v115
    %v131 = vpack.c.b16 %v118, %v117
    %v132 = vpack.c.b16 %v120, %v119
    %v133 = vpack.c.b16 %v122, %v121
    %v134 = vpack.c.b16 %v124, %v123
    %v135 = vpack.c.b16 %v126, %v125
    %v136 = vpack.c.b16 %v128, %v127
    %145 = vmatprep.subr.bf16.mxu0 0
    %146 = vmatpush1.bf16.msra.mxu0 %v136
    %147 = vmatprep.subr.bf16.mxu0 0
    %148 = vmatpush1.bf16.msra.mxu0 %v135
    %149 = vmatprep.subr.bf16.mxu0 0
    %150 = vmatpush1.bf16.msra.mxu0 %v134
    %151 = vmatprep.subr.bf16.mxu0 0
    %152 = vmatpush1.bf16.msra.mxu0 %v133
    %153 = vmatprep.subr.bf16.mxu0 0
    %154 = vmatpush1.bf16.msra.mxu0 %v132
    %155 = vmatprep.subr.bf16.mxu0 0
    %156 = vmatpush1.bf16.msra.mxu0 %v131
    %157 = vmatprep.subr.bf16.mxu0 0
    %158 = vmatpush1.bf16.msra.mxu0 %v130
    %159 = vmatprep.subr.bf16.mxu0 0
    %160 = vmatpush1.bf16.msra.mxu0 %v129
    %161 = vmatprep.subr.bf16.mxu0 0
    %162 = vmatpush2.bf16.msra.mxu0 0
    %163 = vmatprep.subr.bf16.mxu0 0
    %164 = vmatpush2.bf16.msra.mxu0 0
    %165 = vmatprep.subr.bf16.mxu0 0
    %166 = vmatpush2.bf16.msra.mxu0 0
    %167 = vmatprep.subr.bf16.mxu0 0
    %168 = vmatpush2.bf16.msra.mxu0 0
    %169 = vmatprep.subr.bf16.mxu0 0
    %170 = vmatpush2.bf16.msra.mxu0 0
    %171 = vmatprep.subr.bf16.mxu0 0
    %172 = vmatpush2.bf16.msra.mxu0 0
    %173 = vmatprep.subr.bf16.mxu0 0
    %174 = vmatpush2.bf16.msra.mxu0 0
    %175 = vmatprep.subr.bf16.mxu0 0
    %176 = vmatpush2.bf16.msra.mxu0 0
    %177 = vmatprep.mubr.bf16.mxu0 0
    %178 = vmatmul.mubr.bf16.gmra.mxu0 %v80
    %v179 = vpop.f32.mrf.mxu0
    %v180 = vadd.f32 0.0, %v179
    %v181 = vpop.f32.mrf.mxu0
    %v182 = vpop.f32.mrf.mxu0
    %v183 = vadd.f32 0.0, %v182
    %v184 = vpop.f32.mrf.mxu0
    %185 = vdwg.mxu0
    %v186 = vpack.c.bf16 %v183, %v180
    %v187 = vld [vmem:[#allocation5] sm:$0xf]
    %v188 = vld [vmem:[#allocation5 + $0x4] sm:$0xf]
    %v189 = vld [vmem:[#allocation5 + $0x8] sm:$0xf]
    %v190 = vld [vmem:[#allocation5 + $0xc] sm:$0xf]
    %v191 = vld [vmem:[#allocation5 + $0x10] sm:$0xf]
    %v192 = vld [vmem:[#allocation5 + $0x14] sm:$0xf]
    %v193 = vld [vmem:[#allocation5 + $0x18] sm:$0xf]
    %v194 = vld [vmem:[#allocation5 + $0x1c] sm:$0xf]
    %v195 = vld [vmem:[#allocation5 + $0x20] sm:$0xf]
    %v196 = vld [vmem:[#allocation5 + $0x24] sm:$0xf]
    %v197 = vld [vmem:[#allocation5 + $0x28] sm:$0xf]
    %v198 = vld [vmem:[#allocation5 + $0x2c] sm:$0xf]
    %v199 = vld [vmem:[#allocation5 + $0x30] sm:$0xf]
    %v200 = vld [vmem:[#allocation5 + $0x34] sm:$0xf]
    %v201 = vld [vmem:[#allocation5 + $0x38] sm:$0xf]
    %v202 = vld [vmem:[#allocation5 + $0x3c] sm:$0xf]
    %v203 = vld [vmem:[%s3] sm:$0x1]
    %v205 = vlaneseq
    %v206 = vshrl.u32 %v205, 7
    %v207 = vsub.s32 0, %v206
    %v208 = vrot.slane %v203, %v207
    %v226 = vunpack.c.l.b16 %v187
    %v227 = vunpack.c.l.b16 %v188
    %v228 = vunpack.c.l.b16 %v189
    %v229 = vunpack.c.l.b16 %v190
    %v230 = vunpack.c.l.b16 %v191
    %v231 = vunpack.c.l.b16 %v192
    %v232 = vunpack.c.l.b16 %v193
    %v233 = vunpack.c.l.b16 %v194
    %v234 = vunpack.c.l.b16 %v195
    %v235 = vunpack.c.l.b16 %v196
    %v236 = vunpack.c.l.b16 %v197
    %v237 = vunpack.c.l.b16 %v198
    %v238 = vunpack.c.l.b16 %v199
    %v239 = vunpack.c.l.b16 %v200
    %v240 = vunpack.c.l.b16 %v201
    %v241 = vunpack.c.l.b16 %v202
    %v242 = vpack.c.b16 %v227, %v226
    %v243 = vpack.c.b16 %v229, %v228
    %v244 = vpack.c.b16 %v231, %v230
    %v245 = vpack.c.b16 %v233, %v232
    %v246 = vpack.c.b16 %v235, %v234
    %v247 = vpack.c.b16 %v237, %v236
    %v248 = vpack.c.b16 %v239, %v238
    %v249 = vpack.c.b16 %v241, %v240
    %258 = vmatprep.subr.bf16.mxu0 0
    %259 = vmatpush1.bf16.msra.mxu0 %v249
    %260 = vmatprep.subr.bf16.mxu0 0
    %261 = vmatpush1.bf16.msra.mxu0 %v248
    %262 = vmatprep.subr.bf16.mxu0 0
    %263 = vmatpush1.bf16.msra.mxu0 %v247
    %264 = vmatprep.subr.bf16.mxu0 0
    %265 = vmatpush1.bf16.msra.mxu0 %v246
    %266 = vmatprep.subr.bf16.mxu0 0
    %267 = vmatpush1.bf16.msra.mxu0 %v245
    %268 = vmatprep.subr.bf16.mxu0 0
    %269 = vmatpush1.bf16.msra.mxu0 %v244
    %270 = vmatprep.subr.bf16.mxu0 0
    %271 = vmatpush1.bf16.msra.mxu0 %v243
    %272 = vmatprep.subr.bf16.mxu0 0
    %273 = vmatpush1.bf16.msra.mxu0 %v242
    %274 = vmatprep.subr.bf16.mxu0 0
    %275 = vmatpush2.bf16.msra.mxu0 0
    %276 = vmatprep.subr.bf16.mxu0 0
    %277 = vmatpush2.bf16.msra.mxu0 0
    %278 = vmatprep.subr.bf16.mxu0 0
    %279 = vmatpush2.bf16.msra.mxu0 0
    %280 = vmatprep.subr.bf16.mxu0 0
    %281 = vmatpush2.bf16.msra.mxu0 0
    %282 = vmatprep.subr.bf16.mxu0 0
    %283 = vmatpush2.bf16.msra.mxu0 0
    %284 = vmatprep.subr.bf16.mxu0 0
    %285 = vmatpush2.bf16.msra.mxu0 0
    %286 = vmatprep.subr.bf16.mxu0 0
    %287 = vmatpush2.bf16.msra.mxu0 0
    %288 = vmatprep.subr.bf16.mxu0 0
    %289 = vmatpush2.bf16.msra.mxu0 0
    %290 = vmatprep.mubr.bf16.mxu0 0
    %291 = vmatmul.mubr.bf16.gmra.mxu0 %v186
    %v292 = vpop.f32.mrf.mxu0
    %v293 = vadd.f32 %v208, %v292
    %v294 = vpop.f32.mrf.mxu0
    %v295 = vpop.f32.mrf.mxu0
    %v296 = vadd.f32 %v208, %v295
    %v297 = vpop.f32.mrf.mxu0
    %298 = vdwg.mxu0
    %v299 = vmax.f32 %v293, 0.0
    %v300 = vmax.f32 %v296, 0.0
    %v301 = vrot.slane %v299, 4
    %v302 = vadd.f32 %v299, %v301
    %v303 = vrot.slane %v302, 2
    %v304 = vadd.f32 %v302, %v303
    %v305 = vrot.slane %v304, 1
    %v306 = vadd.f32 %v304, %v305
    %v307 = vrot.slane %v300, 4
    %v308 = vadd.f32 %v300, %v307
    %v309 = vrot.slane %v308, 2
    %v310 = vadd.f32 %v308, %v309
    %v311 = vrot.slane %v310, 1
    %v312 = vadd.f32 %v310, %v311
    %v313 = vmul.f32 %v306, 0.125
    %v314 = vmul.f32 %v312, 0.125
    %v315 = vpack.c.bf16 %v313, %v313
    %v316 = vpack.c.bf16 %v314, %v314
    %v317 = vld [vmem:[#allocation7] sm:$0xf]
    %v318 = vld [vmem:[#allocation7 + $0x4] sm:$0xf]
    %v319 = vld [vmem:[#allocation7 + $0x8] sm:$0xf]
    %v320 = vld [vmem:[#allocation7 + $0xc] sm:$0xf]
    %v321 = vld [vmem:[#allocation7 + $0x10] sm:$0xf]
    %v322 = vld [vmem:[#allocation7 + $0x14] sm:$0xf]
    %v323 = vld [vmem:[#allocation7 + $0x18] sm:$0xf]
    %v324 = vld [vmem:[#allocation7 + $0x1c] sm:$0xf]
    %v325 = vld [vmem:[#allocation7 + $0x20] sm:$0xf]
    %v326 = vld [vmem:[#allocation7 + $0x24] sm:$0xf]
    %v327 = vld [vmem:[#allocation7 + $0x28] sm:$0xf]
    %v328 = vld [vmem:[#allocation7 + $0x2c] sm:$0xf]
    %v329 = vld [vmem:[#allocation7 + $0x30] sm:$0xf]
    %v330 = vld [vmem:[#allocation7 + $0x34] sm:$0xf]
    %v331 = vld [vmem:[#allocation7 + $0x38] sm:$0xf]
    %v332 = vld [vmem:[#allocation7 + $0x3c] sm:$0xf]
    %v333 = vld [vmem:[%s5] sm:$0x1]
    %v335 = vlaneseq
    %v336 = vshrl.u32 %v335, 7
    %v337 = vsub.s32 0, %v336
    %v338 = vrot.slane %v333, %v337
    %v342 = vunpack.c.l.b16 %v315
    %v343 = vunpack.c.l.b16 %v316
    %vm344 = vcmask 1041409
    %v345 = vsel %vm344, %v343, %v342
    %v346 = vpack.c.b16 %v345, %v345
    %v364 = vunpack.c.l.b16 %v317
    %v365 = vunpack.c.l.b16 %v318
    %v366 = vunpack.c.l.b16 %v319
    %v367 = vunpack.c.l.b16 %v320
    %v368 = vunpack.c.l.b16 %v321
    %v369 = vunpack.c.l.b16 %v322
    %v370 = vunpack.c.l.b16 %v323
    %v371 = vunpack.c.l.b16 %v324
    %v372 = vunpack.c.l.b16 %v325
    %v373 = vunpack.c.l.b16 %v326
    %v374 = vunpack.c.l.b16 %v327
    %v375 = vunpack.c.l.b16 %v328
    %v376 = vunpack.c.l.b16 %v329
    %v377 = vunpack.c.l.b16 %v330
    %v378 = vunpack.c.l.b16 %v331
    %v379 = vunpack.c.l.b16 %v332
    %v380 = vpack.c.b16 %v365, %v364
    %v381 = vpack.c.b16 %v367, %v366
    %v382 = vpack.c.b16 %v369, %v368
    %v383 = vpack.c.b16 %v371, %v370
    %v384 = vpack.c.b16 %v373, %v372
    %v385 = vpack.c.b16 %v375, %v374
    %v386 = vpack.c.b16 %v377, %v376
    %v387 = vpack.c.b16 %v379, %v378
    %396 = vmatprep.subr.bf16.mxu0 0
    %397 = vmatpush1.bf16.msra.mxu0 %v387
    %398 = vmatprep.subr.bf16.mxu0 0
    %399 = vmatpush1.bf16.msra.mxu0 %v386
    %400 = vmatprep.subr.bf16.mxu0 0
    %401 = vmatpush1.bf16.msra.mxu0 %v385
    %402 = vmatprep.subr.bf16.mxu0 0
    %403 = vmatpush1.bf16.msra.mxu0 %v384
    %404 = vmatprep.subr.bf16.mxu0 0
    %405 = vmatpush1.bf16.msra.mxu0 %v383
    %406 = vmatprep.subr.bf16.mxu0 0
    %407 = vmatpush1.bf16.msra.mxu0 %v382
    %408 = vmatprep.subr.bf16.mxu0 0
    %409 = vmatpush1.bf16.msra.mxu0 %v381
    %410 = vmatprep.subr.bf16.mxu0 0
    %411 = vmatpush1.bf16.msra.mxu0 %v380
    %412 = vmatprep.subr.bf16.mxu0 0
    %413 = vmatpush2.bf16.msra.mxu0 0
    %414 = vmatprep.subr.bf16.mxu0 0
    %415 = vmatpush2.bf16.msra.mxu0 0
    %416 = vmatprep.subr.bf16.mxu0 0
    %417 = vmatpush2.bf16.msra.mxu0 0
    %418 = vmatprep.subr.bf16.mxu0 0
    %419 = vmatpush2.bf16.msra.mxu0 0
    %420 = vmatprep.subr.bf16.mxu0 0
    %421 = vmatpush2.bf16.msra.mxu0 0
    %422 = vmatprep.subr.bf16.mxu0 0
    %423 = vmatpush2.bf16.msra.mxu0 0
    %424 = vmatprep.subr.bf16.mxu0 0
    %425 = vmatpush2.bf16.msra.mxu0 0
    %426 = vmatprep.subr.bf16.mxu0 0
    %427 = vmatpush2.bf16.msra.mxu0 0
    %428 = vmatprep.mubr.bf16.mxu0 0
    %429 = vmatmul.mubr.bf16.gmra.mxu0 %v346
    %v430 = vpop.f32.mrf.mxu0
    %v431 = vadd.f32 %v338, %v430
    %v432 = vpop.f32.mrf.mxu0
    %v433 = vpop.f32.mrf.mxu0
    %v434 = vpop.f32.mrf.mxu0
    %435 = vdwg.mxu0
    %436 = vst [vmem:[#allocation8] sm:$0x3] %v431
    // Predicated region
    $region38: #{tpu_custom_call.1} parent=1 // pred_check
      _
    $region39: #{tpu_custom_call.1} parent=1 // pred_check_branch
      %438 = sbr.rel (0) target = $region41
    $region40: #{tpu_custom_call.1} parent=1 // pred_region
      %s440 = ssub.s32 32, 32
      %441 = vsyncadd [#allocation4], %s440
      %s443 = sshll.u32 [#allocation8], 4
      %s444 = int_to_ptr.vmem [resolvable:$true] %s443
      %446 = dma.vmem_to_hbm [thread:$0]  %s444, 32, %s6, [#allocation4]
    $region41: #{tpu_custom_call.1} parent=1 // pred_fallthru
      _
    // Predicated region
    $region42: #{tpu_custom_call.1} parent=1 // pred_check
      _
    $region43: #{tpu_custom_call.1} parent=1 // pred_check_branch
      %448 = sbr.rel (0) target = $region45
    $region44: #{tpu_custom_call.1} parent=1 // pred_region
      %449 = dma.done [#allocation4], 32
    $region45: #{tpu_custom_call.1} parent=1 // pred_fallthru
      _
    %450 = vsyncpa [#allocation3], 1
    %451 = vsyncpa [#allocation6], 1
    %452 = vsyncpa [#allocation4], 1

// kernel: tpu_custom_call.1
$region0: #{tpu_custom_call.1}
  #allocation0 [shape = 'u32[]', space=smem, size = 0x4, offset = 0x4, fixed_abs, tag = 'smem constant byte address 0x4 - core index']
  #allocation1 [shape = 'u32[144,128]{1,0:T(1,128)}', space=vmem, size = 0x12000, scoped, tag = 'internal scratch']
  %s0 = inlined_call_operand.vmem [shape: s32[16,1], index: 0, kind: input, shape index: {}]
  %s1 = inlined_call_operand.hbm [shape: bf16[128,128], index: 1, kind: input, shape index: {}]
  %s2 = inlined_call_operand.hbm [shape: bf16[128,128], index: 2, kind: input, shape index: {}]
  %s3 = inlined_call_operand.vmem [shape: f32[1,128], index: 3, kind: input, shape index: {}]
  %s4 = inlined_call_operand.hbm [shape: bf16[128,128], index: 4, kind: input, shape index: {}]
  %s5 = inlined_call_operand.vmem [shape: f32[1,128], index: 5, kind: input, shape index: {}]
  %s6 = inlined_call_operand.hbm [shape: f32[2,128], index: 6, kind: output, shape index: {}]
  %s7 = sld [smem:[#allocation0]]
  $region46: #{tpu_custom_call.1} parent=0
    _
  %s9 = ssub.s32 1, %s7
  %s10 = scalar_select 0, %s9, %s7
  $region1: #{tpu_custom_call.1} parent=0
    #allocation2 [shape = 'u8[32768]{0}', space=vmem, size = 0x8000, scoped, tag = 'input window, operand 1, single buffered']
    #allocation3 [shape = 's32[1]{0}', space=sflag, size = 0x4, scoped, tag = 'scoped memory for tpu_custom_call.1']
    #allocation4 [shape = 's32[1]{0}', space=sflag, size = 0x4, scoped, tag = 'scoped memory for tpu_custom_call.1']
    #allocation5 [shape = 'u8[32768]{0}', space=vmem, size = 0x8000, scoped, tag = 'input window, operand 2, single buffered']
    #allocation6 [shape = 's32[1]{0}', space=sflag, size = 0x4, scoped, tag = 'scoped memory for tpu_custom_call.1']
    #allocation7 [shape = 'u8[32768]{0}', space=vmem, size = 0x8000, scoped, tag = 'input window, operand 4, single buffered']
    #allocation8 [shape = 'u8[1024]{0}', space=vmem, size = 0x400, scoped, tag = 'output window, operand 0, single buffered']
    %11 = vsyncpa [#allocation3], 0
    %12 = vsyncpa [#allocation6], 0
    %13 = vsyncpa [#allocation4], 0
    // Predicated region
    $region2: #{tpu_custom_call.1} parent=1 // pred_check
      _
    $region3: #{tpu_custom_call.1} parent=1 // pred_check_branch
      %15 = sbr.rel (0) target = $region5
    $region4: #{tpu_custom_call.1} parent=1 // pred_region
      _
    $region5: #{tpu_custom_call.1} parent=1 // pred_fallthru
      _
    // Predicated region
    $region6: #{tpu_custom_call.1} parent=1 // pred_check
      _
    $region7: #{tpu_custom_call.1} parent=1 // pred_check_branch
      %17 = sbr.rel (0) target = $region9
    $region8: #{tpu_custom_call.1} parent=1 // pred_region
      %s19 = ssub.s32 1024, 1024
      %20 = vsyncadd [#allocation3], %s19
      %s21 = sshll.u32 [#allocation2], 4
      %s22 = int_to_ptr.vmem [resolvable:$true] %s21
      %27 = dma.hbm_to_vmem [thread:$0]  %s1, 1024, %s22, [#allocation3], 64, 64, 4
    $region9: #{tpu_custom_call.1} parent=1 // pred_fallthru
      _
    // Predicated region
    $region10: #{tpu_custom_call.1} parent=1 // pred_check
      _
    $region11: #{tpu_custom_call.1} parent=1 // pred_check_branch
      %29 = sbr.rel (0) target = $region13
    $region12: #{tpu_custom_call.1} parent=1 // pred_region
      %s31 = ssub.s32 1024, 1024
      %32 = vsyncadd [#allocation6], %s31
      %s33 = sshll.u32 [#allocation5], 4
      %s34 = int_to_ptr.vmem [resolvable:$true] %s33
      %39 = dma.hbm_to_vmem [thread:$0]  %s2, 1024, %s34, [#allocation6], 64, 64, 4
    $region13: #{tpu_custom_call.1} parent=1 // pred_fallthru
      _
    // Predicated region
    $region14: #{tpu_custom_call.1} parent=1 // pred_check
      _
    $region15: #{tpu_custom_call.1} parent=1 // pred_check_branch
      %41 = sbr.rel (0) target = $region17
    $region16: #{tpu_custom_call.1} parent=1 // pred_region
      _
    $region17: #{tpu_custom_call.1} parent=1 // pred_fallthru
      _
    // Predicated region
    $region18: #{tpu_custom_call.1} parent=1 // pred_check
      _
    $region19: #{tpu_custom_call.1} parent=1 // pred_check_branch
      %43 = sbr.rel (0) target = $region21
    $region20: #{tpu_custom_call.1} parent=1 // pred_region
      %s45 = ssub.s32 1024, 1024
      %46 = vsyncadd [#allocation6], %s45
      %s47 = sshll.u32 [#allocation7], 4
      %s48 = int_to_ptr.vmem [resolvable:$true] %s47
      %53 = dma.hbm_to_vmem [thread:$0]  %s4, 1024, %s48, [#allocation6], 64, 64, 4
    $region21: #{tpu_custom_call.1} parent=1 // pred_fallthru
      _
    // Predicated region
    $region22: #{tpu_custom_call.1} parent=1 // pred_check
      _
    $region23: #{tpu_custom_call.1} parent=1 // pred_check_branch
      %55 = sbr.rel (0) target = $region25
    $region24: #{tpu_custom_call.1} parent=1 // pred_region
      _
    $region25: #{tpu_custom_call.1} parent=1 // pred_fallthru
      _
    // Predicated region
    $region26: #{tpu_custom_call.1} parent=1 // pred_check
      _
    $region27: #{tpu_custom_call.1} parent=1 // pred_check_branch
      %57 = sbr.rel (0) target = $region29
    $region28: #{tpu_custom_call.1} parent=1 // pred_region
      %58 = dma.done [#allocation3], 1024
    $region29: #{tpu_custom_call.1} parent=1 // pred_fallthru
      _
    // Predicated region
    $region30: #{tpu_custom_call.1} parent=1 // pred_check
      _
    $region31: #{tpu_custom_call.1} parent=1 // pred_check_branch
      %60 = sbr.rel (0) target = $region33
    $region32: #{tpu_custom_call.1} parent=1 // pred_region
      %61 = dma.done [#allocation6], 1024
    $region33: #{tpu_custom_call.1} parent=1 // pred_fallthru
      _
    // Predicated region
    $region34: #{tpu_custom_call.1} parent=1 // pred_check
      _
    $region35: #{tpu_custom_call.1} parent=1 // pred_check_branch
      %63 = sbr.rel (0) target = $region37
    $region36: #{tpu_custom_call.1} parent=1 // pred_region
      %64 = dma.done [#allocation6], 1024
    $region37: #{tpu_custom_call.1} parent=1 // pred_fallthru
      _
    %v66 = vld [vmem:[%s0] sm:$0xff]
    %v67 = vld [vmem:[%s0 + $0x8] sm:$0xff]
    %v68 = vlaneseq
    %v69 = vand.u32 %v68, 127
    %70 = vset.pattern.permute.xlu0 0
    %71 = vperm.xlu0 %70, %v66
    %v72 = vpop.permute.xlu0 %71
    %73 = vset.pattern.permute.xlu0 0
    %74 = vperm.xlu0 %73, %v67
    %v75 = vpop.permute.xlu0 %74
    %vm76 = vcmp.eq.s32.totalorder %v72, %v69
    %vm77 = vcmp.eq.s32.totalorder %v75, %v69
    %v78 = vsel %vm76, 1.0, 0.0
    %v79 = vsel %vm77, 1.0, 0.0
    %v80 = vpack.c.bf16 %v79, %v78
    %v81 = vld [vmem:[#allocation2] sm:$0xf]
    %v82 = vld [vmem:[#allocation2 + $0x4] sm:$0xf]
    %v83 = vld [vmem:[#allocation2 + $0x8] sm:$0xf]
    %v84 = vld [vmem:[#allocation2 + $0xc] sm:$0xf]
    %v85 = vld [vmem:[#allocation2 + $0x10] sm:$0xf]
    %v86 = vld [vmem:[#allocation2 + $0x14] sm:$0xf]
    %v87 = vld [vmem:[#allocation2 + $0x18] sm:$0xf]
    %v88 = vld [vmem:[#allocation2 + $0x1c] sm:$0xf]
    %v89 = vld [vmem:[#allocation2 + $0x20] sm:$0xf]
    %v90 = vld [vmem:[#allocation2 + $0x24] sm:$0xf]
    %v91 = vld [vmem:[#allocation2 + $0x28] sm:$0xf]
    %v92 = vld [vmem:[#allocation2 + $0x2c] sm:$0xf]
    %v93 = vld [vmem:[#allocation2 + $0x30] sm:$0xf]
    %v94 = vld [vmem:[#allocation2 + $0x34] sm:$0xf]
    %v95 = vld [vmem:[#allocation2 + $0x38] sm:$0xf]
    %v96 = vld [vmem:[#allocation2 + $0x3c] sm:$0xf]
    %v113 = vunpack.c.l.b16 %v81
    %v114 = vunpack.c.l.b16 %v82
    %v115 = vunpack.c.l.b16 %v83
    %v116 = vunpack.c.l.b16 %v84
    %v117 = vunpack.c.l.b16 %v85
    %v118 = vunpack.c.l.b16 %v86
    %v119 = vunpack.c.l.b16 %v87
    %v120 = vunpack.c.l.b16 %v88
    %v121 = vunpack.c.l.b16 %v89
    %v122 = vunpack.c.l.b16 %v90
    %v123 = vunpack.c.l.b16 %v91
    %v124 = vunpack.c.l.b16 %v92
    %v125 = vunpack.c.l.b16 %v93
    %v126 = vunpack.c.l.b16 %v94
    %v127 = vunpack.c.l.b16 %v95
    %v128 = vunpack.c.l.b16 %v96
    %v129 = vpack.c.b16 %v114, %v113
    %v130 = vpack.c.b16 %v116, %v115
    %v131 = vpack.c.b16 %v118, %v117
    %v132 = vpack.c.b16 %v120, %v119
    %v133 = vpack.c.b16 %v122, %v121
    %v134 = vpack.c.b16 %v124, %v123
    %v135 = vpack.c.b16 %v126, %v125
    %v136 = vpack.c.b16 %v128, %v127
    %145 = vmatprep.subr.bf16.mxu0 0
    %146 = vmatpush1.bf16.msra.mxu0 %v136
    %147 = vmatprep.subr.bf16.mxu0 0
    %148 = vmatpush1.bf16.msra.mxu0 %v135
    %149 = vmatprep.subr.bf16.mxu0 0
    %150 = vmatpush1.bf16.msra.mxu0 %v134
    %151 = vmatprep.subr.bf16.mxu0 0
    %152 = vmatpush1.bf16.msra.mxu0 %v133
    %153 = vmatprep.subr.bf16.mxu0 0
    %154 = vmatpush1.bf16.msra.mxu0 %v132
    %155 = vmatprep.subr.bf16.mxu0 0
    %156 = vmatpush1.bf16.msra.mxu0 %v131
    %157 = vmatprep.subr.bf16.mxu0 0
    %158 = vmatpush1.bf16.msra.mxu0 %v130
    %159 = vmatprep.subr.bf16.mxu0 0
    %160 = vmatpush1.bf16.msra.mxu0 %v129
    %161 = vmatprep.subr.bf16.mxu0 0
    %162 = vmatpush2.bf16.msra.mxu0 0
    %163 = vmatprep.subr.bf16.mxu0 0
    %164 = vmatpush2.bf16.msra.mxu0 0
    %165 = vmatprep.subr.bf16.mxu0 0
    %166 = vmatpush2.bf16.msra.mxu0 0
    %167 = vmatprep.subr.bf16.mxu0 0
    %168 = vmatpush2.bf16.msra.mxu0 0
    %169 = vmatprep.subr.bf16.mxu0 0
    %170 = vmatpush2.bf16.msra.mxu0 0
    %171 = vmatprep.subr.bf16.mxu0 0
    %172 = vmatpush2.bf16.msra.mxu0 0
    %173 = vmatprep.subr.bf16.mxu0 0
    %174 = vmatpush2.bf16.msra.mxu0 0
    %175 = vmatprep.subr.bf16.mxu0 0
    %176 = vmatpush2.bf16.msra.mxu0 0
    %177 = vmatprep.mubr.bf16.mxu0 0
    %178 = vmatmul.mubr.bf16.gmra.mxu0 %v80
    %v179 = vpop.f32.mrf.mxu0
    %v180 = vadd.f32 0.0, %v179
    %v181 = vpop.f32.mrf.mxu0
    %v182 = vpop.f32.mrf.mxu0
    %v183 = vadd.f32 0.0, %v182
    %v184 = vpop.f32.mrf.mxu0
    %185 = vdwg.mxu0
    %v186 = vpack.c.bf16 %v183, %v180
    %v187 = vld [vmem:[#allocation5] sm:$0xf]
    %v188 = vld [vmem:[#allocation5 + $0x4] sm:$0xf]
    %v189 = vld [vmem:[#allocation5 + $0x8] sm:$0xf]
    %v190 = vld [vmem:[#allocation5 + $0xc] sm:$0xf]
    %v191 = vld [vmem:[#allocation5 + $0x10] sm:$0xf]
    %v192 = vld [vmem:[#allocation5 + $0x14] sm:$0xf]
    %v193 = vld [vmem:[#allocation5 + $0x18] sm:$0xf]
    %v194 = vld [vmem:[#allocation5 + $0x1c] sm:$0xf]
    %v195 = vld [vmem:[#allocation5 + $0x20] sm:$0xf]
    %v196 = vld [vmem:[#allocation5 + $0x24] sm:$0xf]
    %v197 = vld [vmem:[#allocation5 + $0x28] sm:$0xf]
    %v198 = vld [vmem:[#allocation5 + $0x2c] sm:$0xf]
    %v199 = vld [vmem:[#allocation5 + $0x30] sm:$0xf]
    %v200 = vld [vmem:[#allocation5 + $0x34] sm:$0xf]
    %v201 = vld [vmem:[#allocation5 + $0x38] sm:$0xf]
    %v202 = vld [vmem:[#allocation5 + $0x3c] sm:$0xf]
    %v203 = vld [vmem:[%s3] sm:$0x1]
    %v205 = vlaneseq
    %v206 = vshrl.u32 %v205, 7
    %v207 = vsub.s32 0, %v206
    %v208 = vrot.slane %v203, %v207
    %v226 = vunpack.c.l.b16 %v187
    %v227 = vunpack.c.l.b16 %v188
    %v228 = vunpack.c.l.b16 %v189
    %v229 = vunpack.c.l.b16 %v190
    %v230 = vunpack.c.l.b16 %v191
    %v231 = vunpack.c.l.b16 %v192
    %v232 = vunpack.c.l.b16 %v193
    %v233 = vunpack.c.l.b16 %v194
    %v234 = vunpack.c.l.b16 %v195
    %v235 = vunpack.c.l.b16 %v196
    %v236 = vunpack.c.l.b16 %v197
    %v237 = vunpack.c.l.b16 %v198
    %v238 = vunpack.c.l.b16 %v199
    %v239 = vunpack.c.l.b16 %v200
    %v240 = vunpack.c.l.b16 %v201
    %v241 = vunpack.c.l.b16 %v202
    %v242 = vpack.c.b16 %v227, %v226
    %v243 = vpack.c.b16 %v229, %v228
    %v244 = vpack.c.b16 %v231, %v230
    %v245 = vpack.c.b16 %v233, %v232
    %v246 = vpack.c.b16 %v235, %v234
    %v247 = vpack.c.b16 %v237, %v236
    %v248 = vpack.c.b16 %v239, %v238
    %v249 = vpack.c.b16 %v241, %v240
    %258 = vmatprep.subr.bf16.mxu0 0
    %259 = vmatpush1.bf16.msra.mxu0 %v249
    %260 = vmatprep.subr.bf16.mxu0 0
    %261 = vmatpush1.bf16.msra.mxu0 %v248
    %262 = vmatprep.subr.bf16.mxu0 0
    %263 = vmatpush1.bf16.msra.mxu0 %v247
    %264 = vmatprep.subr.bf16.mxu0 0
    %265 = vmatpush1.bf16.msra.mxu0 %v246
    %266 = vmatprep.subr.bf16.mxu0 0
    %267 = vmatpush1.bf16.msra.mxu0 %v245
    %268 = vmatprep.subr.bf16.mxu0 0
    %269 = vmatpush1.bf16.msra.mxu0 %v244
    %270 = vmatprep.subr.bf16.mxu0 0
    %271 = vmatpush1.bf16.msra.mxu0 %v243
    %272 = vmatprep.subr.bf16.mxu0 0
    %273 = vmatpush1.bf16.msra.mxu0 %v242
    %274 = vmatprep.subr.bf16.mxu0 0
    %275 = vmatpush2.bf16.msra.mxu0 0
    %276 = vmatprep.subr.bf16.mxu0 0
    %277 = vmatpush2.bf16.msra.mxu0 0
    %278 = vmatprep.subr.bf16.mxu0 0
    %279 = vmatpush2.bf16.msra.mxu0 0
    %280 = vmatprep.subr.bf16.mxu0 0
    %281 = vmatpush2.bf16.msra.mxu0 0
    %282 = vmatprep.subr.bf16.mxu0 0
    %283 = vmatpush2.bf16.msra.mxu0 0
    %284 = vmatprep.subr.bf16.mxu0 0
    %285 = vmatpush2.bf16.msra.mxu0 0
    %286 = vmatprep.subr.bf16.mxu0 0
    %287 = vmatpush2.bf16.msra.mxu0 0
    %288 = vmatprep.subr.bf16.mxu0 0
    %289 = vmatpush2.bf16.msra.mxu0 0
    %290 = vmatprep.mubr.bf16.mxu0 0
    %291 = vmatmul.mubr.bf16.gmra.mxu0 %v186
    %v292 = vpop.f32.mrf.mxu0
    %v293 = vadd.f32 %v208, %v292
    %v294 = vpop.f32.mrf.mxu0
    %v295 = vpop.f32.mrf.mxu0
    %v296 = vadd.f32 %v208, %v295
    %v297 = vpop.f32.mrf.mxu0
    %298 = vdwg.mxu0
    %v299 = vmax.f32 %v293, 0.0
    %v300 = vmax.f32 %v296, 0.0
    %v301 = vrot.slane %v299, 4
    %v302 = vadd.f32 %v299, %v301
    %v303 = vrot.slane %v302, 2
    %v304 = vadd.f32 %v302, %v303
    %v305 = vrot.slane %v304, 1
    %v306 = vadd.f32 %v304, %v305
    %v307 = vrot.slane %v300, 4
    %v308 = vadd.f32 %v300, %v307
    %v309 = vrot.slane %v308, 2
    %v310 = vadd.f32 %v308, %v309
    %v311 = vrot.slane %v310, 1
    %v312 = vadd.f32 %v310, %v311
    %v313 = vmul.f32 %v306, 0.125
    %v314 = vmul.f32 %v312, 0.125
    %v315 = vpack.c.bf16 %v313, %v313
    %v316 = vpack.c.bf16 %v314, %v314
    %v317 = vld [vmem:[#allocation7] sm:$0xf]
    %v318 = vld [vmem:[#allocation7 + $0x4] sm:$0xf]
    %v319 = vld [vmem:[#allocation7 + $0x8] sm:$0xf]
    %v320 = vld [vmem:[#allocation7 + $0xc] sm:$0xf]
    %v321 = vld [vmem:[#allocation7 + $0x10] sm:$0xf]
    %v322 = vld [vmem:[#allocation7 + $0x14] sm:$0xf]
    %v323 = vld [vmem:[#allocation7 + $0x18] sm:$0xf]
    %v324 = vld [vmem:[#allocation7 + $0x1c] sm:$0xf]
    %v325 = vld [vmem:[#allocation7 + $0x20] sm:$0xf]
    %v326 = vld [vmem:[#allocation7 + $0x24] sm:$0xf]
    %v327 = vld [vmem:[#allocation7 + $0x28] sm:$0xf]
    %v328 = vld [vmem:[#allocation7 + $0x2c] sm:$0xf]
    %v329 = vld [vmem:[#allocation7 + $0x30] sm:$0xf]
    %v330 = vld [vmem:[#allocation7 + $0x34] sm:$0xf]
    %v331 = vld [vmem:[#allocation7 + $0x38] sm:$0xf]
    %v332 = vld [vmem:[#allocation7 + $0x3c] sm:$0xf]
    %v333 = vld [vmem:[%s5] sm:$0x1]
    %v335 = vlaneseq
    %v336 = vshrl.u32 %v335, 7
    %v337 = vsub.s32 0, %v336
    %v338 = vrot.slane %v333, %v337
    %v342 = vunpack.c.l.b16 %v315
    %v343 = vunpack.c.l.b16 %v316
    %vm344 = vcmask 1041409
    %v345 = vsel %vm344, %v343, %v342
    %v346 = vpack.c.b16 %v345, %v345
    %v364 = vunpack.c.l.b16 %v317
    %v365 = vunpack.c.l.b16 %v318
    %v366 = vunpack.c.l.b16 %v319
    %v367 = vunpack.c.l.b16 %v320
    %v368 = vunpack.c.l.b16 %v321
    %v369 = vunpack.c.l.b16 %v322
    %v370 = vunpack.c.l.b16 %v323
    %v371 = vunpack.c.l.b16 %v324
    %v372 = vunpack.c.l.b16 %v325
    %v373 = vunpack.c.l.b16 %v326
    %v374 = vunpack.c.l.b16 %v327
    %v375 = vunpack.c.l.b16 %v328
    %v376 = vunpack.c.l.b16 %v329
    %v377 = vunpack.c.l.b16 %v330
    %v378 = vunpack.c.l.b16 %v331
    %v379 = vunpack.c.l.b16 %v332
    %v380 = vpack.c.b16 %v365, %v364
    %v381 = vpack.c.b16 %v367, %v366
    %v382 = vpack.c.b16 %v369, %v368
    %v383 = vpack.c.b16 %v371, %v370
    %v384 = vpack.c.b16 %v373, %v372
    %v385 = vpack.c.b16 %v375, %v374
    %v386 = vpack.c.b16 %v377, %v376
    %v387 = vpack.c.b16 %v379, %v378
    %396 = vmatprep.subr.bf16.mxu0 0
    %397 = vmatpush1.bf16.msra.mxu0 %v387
    %398 = vmatprep.subr.bf16.mxu0 0
    %399 = vmatpush1.bf16.msra.mxu0 %v386
    %400 = vmatprep.subr.bf16.mxu0 0
    %401 = vmatpush1.bf16.msra.mxu0 %v385
    %402 = vmatprep.subr.bf16.mxu0 0
    %403 = vmatpush1.bf16.msra.mxu0 %v384
    %404 = vmatprep.subr.bf16.mxu0 0
    %405 = vmatpush1.bf16.msra.mxu0 %v383
    %406 = vmatprep.subr.bf16.mxu0 0
    %407 = vmatpush1.bf16.msra.mxu0 %v382
    %408 = vmatprep.subr.bf16.mxu0 0
    %409 = vmatpush1.bf16.msra.mxu0 %v381
    %410 = vmatprep.subr.bf16.mxu0 0
    %411 = vmatpush1.bf16.msra.mxu0 %v380
    %412 = vmatprep.subr.bf16.mxu0 0
    %413 = vmatpush2.bf16.msra.mxu0 0
    %414 = vmatprep.subr.bf16.mxu0 0
    %415 = vmatpush2.bf16.msra.mxu0 0
    %416 = vmatprep.subr.bf16.mxu0 0
    %417 = vmatpush2.bf16.msra.mxu0 0
    %418 = vmatprep.subr.bf16.mxu0 0
    %419 = vmatpush2.bf16.msra.mxu0 0
    %420 = vmatprep.subr.bf16.mxu0 0
    %421 = vmatpush2.bf16.msra.mxu0 0
    %422 = vmatprep.subr.bf16.mxu0 0
    %423 = vmatpush2.bf16.msra.mxu0 0
    %424 = vmatprep.subr.bf16.mxu0 0
    %425 = vmatpush2.bf16.msra.mxu0 0
    %426 = vmatprep.subr.bf16.mxu0 0
    %427 = vmatpush2.bf16.msra.mxu0 0
    %428 = vmatprep.mubr.bf16.mxu0 0
    %429 = vmatmul.mubr.bf16.gmra.mxu0 %v346
    %v430 = vpop.f32.mrf.mxu0
    %v431 = vadd.f32 %v338, %v430
    %v432 = vpop.f32.mrf.mxu0
    %v433 = vpop.f32.mrf.mxu0
    %v434 = vpop.f32.mrf.mxu0
    %435 = vdwg.mxu0
    %436 = vst [vmem:[#allocation8] sm:$0x3] %v431
    // Predicated region
    $region38: #{tpu_custom_call.1} parent=1 // pred_check
      _
    $region39: #{tpu_custom_call.1} parent=1 // pred_check_branch
      %438 = sbr.rel (0) target = $region41
    $region40: #{tpu_custom_call.1} parent=1 // pred_region
      %s440 = ssub.s32 32, 32
      %441 = vsyncadd [#allocation4], %s440
      %s443 = sshll.u32 [#allocation8], 4
      %s444 = int_to_ptr.vmem [resolvable:$true] %s443
      %446 = dma.vmem_to_hbm [thread:$0]  %s444, 32, %s6, [#allocation4]
    $region41: #{tpu_custom_call.1} parent=1 // pred_fallthru
      _
    // Predicated region
    $region42: #{tpu_custom_call.1} parent=1 // pred_check
      _
    $region43: #{tpu_custom_call.1} parent=1 // pred_check_branch
      %448 = sbr.rel (0) target = $region45
    $region44: #{tpu_custom_call.1} parent=1 // pred_region
      %449 = dma.done [#allocation4], 32
    $region45: #{tpu_custom_call.1} parent=1 // pred_fallthru
      _
    %450 = vsyncpa [#allocation3], 1
    %451 = vsyncpa [#allocation6], 1
    %452 = vsyncpa [#allocation4], 1

</llo_original>
